<compile_context>
chip_gen: v6e
topology: v6e:2x2x1
jax: 0.10.0
libtpu: 0.0.40
codegen_flags: <defaults>
</compile_context>

<pallas_src>
import functools

import jax
import jax.numpy as jnp
from jax.experimental import pallas as pl
from jax.experimental.pallas import tpu as pltpu


def _round_up(x, m):
    return ((x + m - 1) // m) * m


def _largest_divisor_leq(n, cap):
    cap = max(1, min(n, cap))
    for d in range(cap, 0, -1):
        if n % d == 0:
            return d
    return 1


def _gpw_kernel(x_ref, w_ref, o_ref, *, b_tile):
    # x_ref: (b_tile, Cin, t_hw)  -- channels on sublanes, spatial on lanes
    # w_ref: (Cout, Cin)          -- block-diagonal grouped weight, rows pre-shuffled
    # o_ref: (b_tile, Cout, t_hw)
    w = w_ref[...]
    for b in range(b_tile):  # static, small (<= 8)
        o_ref[b] = jnp.dot(
            w, x_ref[b], preferred_element_type=jnp.float32
        ).astype(o_ref.dtype)


def group_pointwise_conv_shuffle(x_nchw, weight, *, groups, shuffle=True):
    """Grouped 1x1 conv (bias=False) + channel shuffle.

    x_nchw: (B, Cin, H, W)
    weight: (Cout, Cin // groups)   (PyTorch Conv2d weight with k-dims squeezed)
    returns (B, Cout, H, W)
    """
    B, Cin, H, W = x_nchw.shape
    Cout = weight.shape[0]
    assert Cin % groups == 0 and Cout % groups == 0
    cg_in = Cin // groups
    cg_out = Cout // groups

    # --- dense block-diagonal weight with the shuffle baked in ----------------
    w_dense = jnp.zeros((Cout, Cin), dtype=weight.dtype)
    for g in range(groups):  # static, small
        w_dense = w_dense.at[
            g * cg_out:(g + 1) * cg_out, g * cg_in:(g + 1) * cg_in
        ].set(weight[g * cg_out:(g + 1) * cg_out, :])
    if shuffle:
        ch = jnp.arange(Cout)
        # shuffled output channel j takes conv output channel perm[j]
        perm = (ch % groups) * cg_out + (ch // groups)
        w_dense = w_dense[perm]

    # --- tiling: lanes = spatial, no wrapper pad/slice/transpose --------------
    HW = H * W
    HW128 = _round_up(HW, 128)
    dt_bytes = jnp.dtype(x_nchw.dtype).itemsize
    bytes_per_col = (Cin + Cout) * dt_bytes
    w_bytes = Cout * Cin * jnp.dtype(w_dense.dtype).itemsize

    try:
        vmem_cap = int(pltpu.get_tpu_info().vmem_capacity_bytes)
    except Exception:
        vmem_cap = 64 << 20  # v7x-safe default

    # Single-buffer big constant weights (they are fetched once anyway).
    single_buffer_weight = w_bytes > (2 << 20)
    w_bufs = 1 if single_buffer_weight else 2

    # VMEM budget for the double-buffered activation blocks.
    act_budget = max(4 << 20, int(0.6 * vmem_cap) - w_bufs * w_bytes)
    lanes_budget = max(128, act_budget // (2 * bytes_per_col))

    # Spatial tile: lane-dense multiple of 128, as large as the budget allows.
    t_hw = max(128, min(HW128, (lanes_budget // 128) * 128))
    n_sp = -(-HW // t_hw)

    # Fold several batch images per step when one tile already covers the whole
    # image, so per-step DMA is large enough to hide the ~600-cycle step cost.
    b_tile = 1
    if n_sp == 1:
        fold_cap = min(8, max(1, lanes_budget // HW128))
        b_tile = _largest_divisor_leq(B, fold_cap)
        # v7x guard: keep >= 2 "parallel" grid steps so both TensorCores work.
        if B // b_tile < 2:
            if B >= 2:
                b_tile = _largest_divisor_leq(B, max(1, B // 2))
            elif HW128 >= 256:
                t_hw = max(128, ((HW128 // 2) // 128) * 128)
                n_sp = -(-HW // t_hw)

    blk_bytes = 2 * b_tile * bytes_per_col * t_hw  # double-buffered in+out blocks
    vmem_limit = blk_bytes + w_bufs * w_bytes + (8 << 20)
    vmem_limit = max(16 << 20, min(int(vmem_limit), int(0.78 * vmem_cap)))

    cost = pl.CostEstimate(
        flops=2 * B * HW * Cout * Cin,
        transcendentals=0,
        bytes_accessed=B * HW * (Cin + Cout) * dt_bytes + w_bytes,
    )

    x3 = x_nchw.reshape(B, Cin, HW)  # free view of NCHW

    if single_buffer_weight:
        w_spec = pl.BlockSpec((Cout, Cin), lambda i, j: (0, 0),
                              pipeline_mode=pl.Buffered(1))
    else:
        w_spec = pl.BlockSpec((Cout, Cin), lambda i, j: (0, 0))

    out3 = pl.pallas_call(
        functools.partial(_gpw_kernel, b_tile=b_tile),
        out_shape=jax.ShapeDtypeStruct((B, Cout, HW), x_nchw.dtype),
        grid_spec=pltpu.PrefetchScalarGridSpec(
            num_scalar_prefetch=0,
            grid=(B // b_tile, n_sp),
            in_specs=[
                pl.BlockSpec((b_tile, Cin, t_hw), lambda i, j: (i, 0, j)),
                w_spec,  # constant block index -> fetched once
            ],
            out_specs=pl.BlockSpec((b_tile, Cout, t_hw), lambda i, j: (i, 0, j)),
        ),
        compiler_params=pltpu.CompilerParams(
            dimension_semantics=("parallel", "parallel"),
            vmem_limit_bytes=vmem_limit,
        ),
        cost_estimate=cost,
    )(x3, w_dense)

    return out3.reshape(B, Cout, H, W)


def _reference(x_nchw, weight, groups):
    # pure-JAX reference: grouped 1x1 conv (bias=False) + channel shuffle
    B, Cin, H, W = x_nchw.shape
    Cout = weight.shape[0]
    cg_in, cg_out = Cin // groups, Cout // groups
    xg = x_nchw.reshape(B, groups, cg_in, H, W)
    wg = weight.reshape(groups, cg_out, cg_in)
    out = jnp.einsum("bgihw,goi->bgohw", xg, wg).reshape(B, Cout, H, W)
    out = out.reshape(B, groups, cg_out, H, W).transpose(0, 2, 1, 3, 4)
    return out.reshape(B, Cout, H, W)


if __name__ == "__main__":
    # Small shapes consistent with the module (nin, nout divisible by groups=3).
    B, Cin, Cout, H, W = 2, 6, 12, 16, 16
    groups = 3

    key = jax.random.PRNGKey(0)
    kx, kw = jax.random.split(key)
    x = jax.random.normal(kx, (B, Cin, H, W), dtype=jnp.float32)
    # PyTorch Conv2d weight shape is (nout, nin//groups, 1, 1); k-dims squeezed.
    weight = jax.random.normal(kw, (Cout, Cin // groups), dtype=jnp.float32) * 0.1

    out = group_pointwise_conv_shuffle(x, weight, groups=groups)
    out = jax.block_until_ready(out)

    ref = _reference(x, weight, groups)
    assert out.shape == (B, Cout, H, W)
    assert jnp.allclose(out, ref, atol=1e-5, rtol=1e-5)

    print("KERNEL_OK")
</pallas_src>

<mosaic_0001>
module attributes {stable_mosaic.version = 11 : i64} {
  func.func @_gpw_kernel(%arg0: i32, %arg1: i32, %arg2: memref<1x6x256xf32, #tpu.memory_space<vmem>>, %arg3: memref<12x6xf32, #tpu.memory_space<vmem>>, %arg4: memref<1x12x256xf32, #tpu.memory_space<vmem>>) attributes {dimension_semantics = [#tpu.dimension_semantics<parallel>, #tpu.dimension_semantics<parallel>], iteration_bounds = array<i64: 2, 1>, scalar_prefetch = 0 : i64, scratch_operands = 0 : i64, tpu.core_type = #tpu.core_type<tc>, window_params = [{transform_indices = @transform_0, window_bounds = array<i64: 1, 6, 256>}, {pipeline_mode = #tpu.pipeline_mode<synchronous>, transform_indices = @transform_1, window_bounds = array<i64: 12, 6>}, {transform_indices = @transform_2, window_bounds = array<i64: 1, 12, 256>}]} {
    %c0 = arith.constant 0 : index
    %c0_0 = arith.constant 0 : index
    %0 = vector.load %arg3[%c0, %c0_0] : memref<12x6xf32, #tpu.memory_space<vmem>>, vector<12x6xf32>
    %c0_1 = arith.constant 0 : index
    %c0_2 = arith.constant 0 : index
    %c0_3 = arith.constant 0 : index
    %1 = vector.load %arg2[%c0_1, %c0_2, %c0_3] : memref<1x6x256xf32, #tpu.memory_space<vmem>>, vector<1x6x256xf32>
    %2 = vector.shape_cast %1 : vector<1x6x256xf32> to vector<6x256xf32>
    %cst = arith.constant dense<0.000000e+00> : vector<12x256xf32>
    %3 = tpu.matmul %0, %2, %cst {dimension_numbers = #tpu.dot_dimension_numbers<[1], [0], [0], [1], [0, 0, 1, 1], [], []>} : vector<12x6xf32>, vector<6x256xf32>, vector<12x256xf32> -> vector<12x256xf32>
    %c0_4 = arith.constant 0 : index
    %c0_5 = arith.constant 0 : index
    %c0_6 = arith.constant 0 : index
    %4 = vector.load %arg4[%c0_4, %c0_5, %c0_6] : memref<1x12x256xf32, #tpu.memory_space<vmem>>, vector<1x12x256xf32>
    %5 = vector.shape_cast %4 : vector<1x12x256xf32> to vector<12x256xf32>
    %6 = vector.shape_cast %3 : vector<12x256xf32> to vector<1x12x256xf32>
    tpu.vector_store %arg4[%c0_4, %c0_5, %c0_6], %6 {strides = array<i32>} : memref<1x12x256xf32, #tpu.memory_space<vmem>>, vector<1x12x256xf32>,
    return
  }
  func.func @transform_0(%arg0: i32, %arg1: i32) -> (i32, i32, i32) {
    %c0_i32 = arith.constant 0 : i32
    %c0_i32_0 = arith.constant 0 : i32
    return %arg0, %c0_i32, %arg1 : i32, i32, i32
  }
  func.func @transform_1(%arg0: i32, %arg1: i32) -> (i32, i32) {
    %c0_i32 = arith.constant 0 : i32
    %c0_i32_0 = arith.constant 0 : i32
    %c0_i32_1 = arith.constant 0 : i32
    return %c0_i32, %c0_i32_0 : i32, i32
  }
  func.func @transform_2(%arg0: i32, %arg1: i32) -> (i32, i32, i32) {
    %c0_i32 = arith.constant 0 : i32
    %c0_i32_0 = arith.constant 0 : i32
    return %arg0, %c0_i32, %arg1 : i32, i32, i32
  }
}

</mosaic_0001>

<llo_original>
// kernel: tpu_custom_call.1
$region0: #{tpu_custom_call.1}
  #allocation0 [shape = 'u32[]', space=smem, size = 0x4, offset = 0x4, fixed_abs, tag = 'smem constant byte address 0x4 - core index']
  #allocation1 [shape = 'u32[144,128]{1,0:T(1,128)}', space=vmem, size = 0x12000, scoped, tag = 'internal scratch']
  %s0 = inlined_call_operand.vmem [shape: f32[2,6,256], index: 0, kind: input, shape index: {}]
  %s1 = inlined_call_operand.vmem [shape: f32[12,6], index: 1, kind: input, shape index: {}]
  %s2 = inlined_call_operand.vmem [shape: f32[2,12,256], index: 2, kind: output, shape index: {}]
  %s3 = sld [smem:[#allocation0]]
  $region41: #{tpu_custom_call.1} parent=0
    _
  %s5 = ssub.s32 1, %s3
  %s6 = scalar_select 0, %s5, %s3
  loop: start=0, step=1, limit=4
  $region2: #{tpu_custom_call.1} parent=0 // loop_pre_header
    _
  $region3: #{tpu_custom_call.1} parent=0 // loop_header
    %s8 = sphi 0, %s12
    %p9 = scmp.ge.s32.totalorder %s8, 4
    %s15 = sphi 0, %s27
    %s16 = sphi 0, %s23
    %s17 = sphi 0, %s15
    %s18 = sphi 0, %s16
    %s19 = sphi 0, %s17
    %s20 = sphi 0, %s18
    %s32 = sphi 0, %s34
    %s35 = sphi 0, %s32
    %s36 = sphi 0, %s35
    %s52 = sphi 0, %s36
    %s56 = sphi 0, %s56
    %s58 = sphi 0, %s56
    %s59 = sphi 0, %s58
    %s73 = sphi 0, %s59
    %s81 = sphi 0, %s83
    %s84 = sphi 0, %s81
    %s85 = sphi 0, %s84
    %s101 = sphi 0, %s85
  $region4: #{tpu_custom_call.1} parent=0 // loop_header_branch
    %11 = sbr.rel (%p9) target = $region8
  $region5: #{tpu_custom_call.1} parent=0 // loop_body
    %s13 = ssub.s32 %s8, 1
    %s14 = ssub.s32 %s8, 2
    %s21 = sadd.s32 1, %s16
    %p22 = scmp.ge.s32.totalorder %s21, 1
    %s23 = scalar_select %p22, 0, %s21
    %s24 = sadd.s32 1, %s15
    %s25 = scalar_select %p22, %s24, %s15
    %p26 = scmp.ge.s32.totalorder %s25, 2
    %s27 = scalar_select %p26, 0, %s25
    %s28 = ssub.s32 %s15, %s27
    %s29 = ssub.s32 %s16, %s23
    %s30 = sor.u32 %s28, %s29
    %p31 = scmp.eq.s32.totalorder %s30, 0
    %s33 = sadd.s32 %s32, 1
    %s34 = scalar_select %p31, %s32, %s33
    %p37 = pneg %p31
    %p38 = scmp.eq.s32.totalorder %s8, 1
    %p39 = por %p37, %p38
    %p40 = scmp.ne.s32.totalorder %s32, %s35
    %p41 = scmp.eq.s32.totalorder %s8, 0
    %p42 = por %p40, %p41
    %p43 = scmp.ne.s32.totalorder %s32, %s35
    %p44 = scmp.eq.s32.totalorder %s13, 1
    %p45 = por %p43, %p44
    %p46 = scmp.ne.s32.totalorder %s35, %s36
    %p47 = scmp.eq.s32.totalorder %s13, 0
    %p48 = por %p46, %p47
    %p49 = scmp.ne.s32.totalorder %s35, %s36
    %p50 = scmp.eq.s32.totalorder %s14, 1
    %p51 = por %p49, %p50
    %p53 = scmp.ne.s32.totalorder %s36, %s52
    %p54 = scmp.eq.s32.totalorder %s14, 0
    %p55 = por %p53, %p54
    %s57 = sadd.s32 %s56, 1
    %p60 = scmp.eq.s32.totalorder %s8, 1
    %p61 = scmp.ne.s32.totalorder %s56, %s58
    %p62 = scmp.eq.s32.totalorder %s8, 0
    %p63 = por %p61, %p62
    %p64 = scmp.ne.s32.totalorder %s56, %s58
    %p65 = scmp.eq.s32.totalorder %s13, 1
    %p66 = por %p64, %p65
    %p67 = scmp.ne.s32.totalorder %s58, %s59
    %p68 = scmp.eq.s32.totalorder %s13, 0
    %p69 = por %p67, %p68
    %p70 = scmp.ne.s32.totalorder %s58, %s59
    %p71 = scmp.eq.s32.totalorder %s14, 1
    %p72 = por %p70, %p71
    %p74 = scmp.ne.s32.totalorder %s59, %s73
    %p75 = scmp.eq.s32.totalorder %s14, 0
    %p76 = por %p74, %p75
    %s77 = ssub.s32 %s15, %s27
    %s78 = ssub.s32 %s16, %s23
    %s79 = sor.u32 %s77, %s78
    %p80 = scmp.eq.s32.totalorder %s79, 0
    %s82 = sadd.s32 %s81, 1
    %s83 = scalar_select %p80, %s81, %s82
    %p86 = pneg %p80
    %p87 = scmp.eq.s32.totalorder %s8, 1
    %p88 = por %p86, %p87
    %p89 = scmp.ne.s32.totalorder %s81, %s84
    %p90 = scmp.eq.s32.totalorder %s8, 0
    %p91 = por %p89, %p90
    %p92 = scmp.ne.s32.totalorder %s81, %s84
    %p93 = scmp.eq.s32.totalorder %s13, 1
    %p94 = por %p92, %p93
    %p95 = scmp.ne.s32.totalorder %s84, %s85
    %p96 = scmp.eq.s32.totalorder %s13, 0
    %p97 = por %p95, %p96
    %p98 = scmp.ne.s32.totalorder %s84, %s85
    %p99 = scmp.eq.s32.totalorder %s14, 1
    %p100 = por %p98, %p99
    %p102 = scmp.ne.s32.totalorder %s85, %s101
    %p103 = scmp.eq.s32.totalorder %s14, 0
    %p104 = por %p102, %p103
    %p105 = scmp.le.s32.totalorder 1, %s8
    %p106 = scmp.lt.s32.totalorder %s8, 3
    %p107 = pnand %p105, %p106
    %p108 = pneg %p107
    // Predicated region
    $region9: #{tpu_custom_call.1} parent=5 // pred_check
      _
    $region10: #{tpu_custom_call.1} parent=5 // pred_check_branch
      %110 = sbr.rel (%p107) target = $region12
    $region11: #{tpu_custom_call.1} parent=5 // pred_region
      %s111 = ssub.s32 %s8, 1
      // Predicated region
      $region13: #{tpu_custom_call.1} parent=11 // pred_check
        %p112 = pneg %p69
      $region14: #{tpu_custom_call.1} parent=11 // pred_check_branch
        %114 = sbr.rel (%p112) target = $region16
      $region15: #{tpu_custom_call.1} parent=11 // pred_region
        _
      $region16: #{tpu_custom_call.1} parent=11 // pred_fallthru
        _
    $region12: #{tpu_custom_call.1} parent=5 // pred_fallthru
      _
    %p115 = scmp.lt.s32.totalorder %s8, 2
    // Predicated region
    $region17: #{tpu_custom_call.1} parent=5 // pred_check
      %p116 = pneg %p115
    $region18: #{tpu_custom_call.1} parent=5 // pred_check_branch
      %118 = sbr.rel (%p116) target = $region20
    $region19: #{tpu_custom_call.1} parent=5 // pred_region
      // Predicated region
      $region21: #{tpu_custom_call.1} parent=19 // pred_check
        %p119 = pneg %p42
      $region22: #{tpu_custom_call.1} parent=19 // pred_check_branch
        %121 = sbr.rel (%p119) target = $region24
      $region23: #{tpu_custom_call.1} parent=19 // pred_region
        %s122 = smul.u32 2, %s16
        %p123 = scmp.lt.s32.totalorder %s15, 1
        %s124 = scalar_select %p123, %s15, 1
        %p125 = scmp.lt.s32.totalorder %s122, 1
        %s126 = scalar_select %p125, %s122, 1
        %s127 = smul.addr %s124, 2
        %s128 = sadd.s32 %s126, %s127
        %s129 = smul.addr %s128, 8
        %s130 = scalar_lea.vmem %s0, %s129
        %s131 = smul.u32 2, %s16
      $region24: #{tpu_custom_call.1} parent=19 // pred_fallthru
        _
    $region20: #{tpu_custom_call.1} parent=5 // pred_fallthru
      _
    %p132 = scmp.le.s32.totalorder 1, %s8
    %p133 = scmp.lt.s32.totalorder %s8, 3
    %p134 = pnand %p132, %p133
    %p135 = pneg %p134
    // Predicated region
    $region25: #{tpu_custom_call.1} parent=5 // pred_check
      _
    $region26: #{tpu_custom_call.1} parent=5 // pred_check_branch
      %137 = sbr.rel (%p134) target = $region28
    $region27: #{tpu_custom_call.1} parent=5 // pred_region
      %s138 = ssub.s32 %s8, 1
      %s139 = smul.u32 2, %s18
      %p140 = scmp.lt.s32.totalorder %s17, 1
      %s141 = scalar_select %p140, %s17, 1
      %p142 = scmp.lt.s32.totalorder %s139, 1
      %s143 = scalar_select %p142, %s139, 1
      %s144 = smul.addr %s141, 2
      %s145 = sadd.s32 %s143, %s144
      %s146 = smul.addr %s145, 8
      %s147 = scalar_lea.vmem %s0, %s146
      %p148 = pneg %p48
      %p149 = pneg %p45
      %p150 = pneg %p69
      %p151 = pneg %p66
      %p152 = pneg %p97
      %p153 = pneg %p94
      %s154 = smul.u32 2, %s18
      %p155 = scmp.lt.s32.totalorder %s17, 1
      %s156 = scalar_select %p155, %s17, 1
      %p157 = scmp.lt.s32.totalorder %s154, 1
      %s158 = scalar_select %p157, %s154, 1
      %s159 = smul.addr %s156, 4
      %s160 = sadd.s32 %s158, %s159
      %s161 = smul.addr %s160, 8
      %s162 = scalar_lea.vmem %s2, %s161
      %s163 = smul.u32 2, %s18
      %p164 = scmp.lt.s32.totalorder %s17, 1
      %s165 = scalar_select %p164, %s17, 1
      %p166 = scmp.lt.s32.totalorder %s163, 1
      %s167 = scalar_select %p166, %s163, 1
      %s168 = smul.addr %s165, 2
      %s169 = sadd.s32 %s167, %s168
      %s170 = smul.addr %s169, 8
      %s171 = scalar_lea.vmem %s0, %s170
      %s172 = smul.u32 2, %s18
      %s173 = smul.u32 2, %s18
      %p174 = scmp.lt.s32.totalorder %s17, 1
      %s175 = scalar_select %p174, %s17, 1
      %p176 = scmp.lt.s32.totalorder %s173, 1
      %s177 = scalar_select %p176, %s173, 1
      %s178 = smul.addr %s175, 4
      %s179 = sadd.s32 %s177, %s178
      %s180 = smul.addr %s179, 8
      %s181 = scalar_lea.vmem %s2, %s180
      %s182 = smul.u32 2, %s18
      %v183 = vld [vmem:[%s1] sm:$0xff]
      %v184 = vld [vmem:[%s1 + $0x8] sm:$0xf]
      %v185 = vld [vmem:[%s171] sm:$0x3f]
      %v186 = vld [vmem:[%s171 + $0x8] sm:$0x3f]
      %vm187 = vcmask 48128
      %v189 = vsel %vm187, %v183, 0
      %v192 = vsel %vm187, %v184, 0
      %vm194 = vcmask 1045504
      %v196 = vsel %vm194, %v185, 0
      %v199 = vsel %vm194, %v186, 0
      %201 = vmatprep.subr.mxu0 0.0
      %202 = vmatpush1.msra.mxu0 0.0
      %203 = vmatprep.subr.mxu0 0.0
      %204 = vmatpush1.msra.mxu0 0.0
      %205 = vmatprep.subr.mxu0 0.0
      %206 = vmatpush1.msra.mxu0 0.0
      %207 = vmatprep.subr.mxu0 0.0
      %208 = vmatpush1.msra.mxu0 0.0
      %209 = vmatprep.subr.mxu0 0.0
      %210 = vmatpush1.msra.mxu0 0.0
      %211 = vmatprep.subr.mxu0 0.0
      %212 = vmatpush1.msra.mxu0 0.0
      %213 = vmatprep.subr.mxu0 0.0
      %214 = vmatpush1.msra.mxu0 0.0
      %215 = vmatprep.subr.mxu0 0.0
      %216 = vmatpush1.msra.mxu0 0.0
      %217 = vmatprep.subr.mxu0 0.0
      %218 = vmatpush1.msra.mxu0 0.0
      %219 = vmatprep.subr.mxu0 0.0
      %220 = vmatpush1.msra.mxu0 0.0
      %221 = vmatprep.subr.mxu0 0.0
      %222 = vmatpush1.msra.mxu0 0.0
      %223 = vmatprep.subr.mxu0 0.0
      %224 = vmatpush1.msra.mxu0 0.0
      %225 = vmatprep.subr.mxu0 0.0
      %226 = vmatpush1.msra.mxu0 0.0
      %227 = vmatprep.subr.mxu0 0.0
      %228 = vmatpush1.msra.mxu0 0.0
      %229 = vmatprep.subr.mxu0 0.0
      %230 = vmatpush1.msra.mxu0 0.0
      %231 = vmatprep.subr.mxu0 %v199
      %232 = vmatpush1.msra.mxu0 %v196
      %233 = vmatprep.subr.mxu0 0.0
      %234 = vmatpush2.msra.mxu0 0.0
      %235 = vmatprep.subr.mxu0 0.0
      %236 = vmatpush2.msra.mxu0 0.0
      %237 = vmatprep.subr.mxu0 0.0
      %238 = vmatpush2.msra.mxu0 0.0
      %239 = vmatprep.subr.mxu0 0.0
      %240 = vmatpush2.msra.mxu0 0.0
      %241 = vmatprep.subr.mxu0 0.0
      %242 = vmatpush2.msra.mxu0 0.0
      %243 = vmatprep.subr.mxu0 0.0
      %244 = vmatpush2.msra.mxu0 0.0
      %245 = vmatprep.subr.mxu0 0.0
      %246 = vmatpush2.msra.mxu0 0.0
      %247 = vmatprep.subr.mxu0 0.0
      %248 = vmatpush2.msra.mxu0 0.0
      %249 = vmatprep.subr.mxu0 0.0
      %250 = vmatpush2.msra.mxu0 0.0
      %251 = vmatprep.subr.mxu0 0.0
      %252 = vmatpush2.msra.mxu0 0.0
      %253 = vmatprep.subr.mxu0 0.0
      %254 = vmatpush2.msra.mxu0 0.0
      %255 = vmatprep.subr.mxu0 0.0
      %256 = vmatpush2.msra.mxu0 0.0
      %257 = vmatprep.subr.mxu0 0.0
      %258 = vmatpush2.msra.mxu0 0.0
      %259 = vmatprep.subr.mxu0 0.0
      %260 = vmatpush2.msra.mxu0 0.0
      %261 = vmatprep.subr.mxu0 0.0
      %262 = vmatpush2.msra.mxu0 0.0
      %263 = vmatprep.subr.mxu0 0.0
      %264 = vmatpush2.msra.mxu0 0.0
      %265 = vmatprep.mubr.f32.mxu0 0.0
      %266 = vmatmul.mubr.f32.gmra.mxu0 %v189
      %v267 = vpop.f32.mrf.mxu0
      %v268 = vadd.f32 0.0, %v267
      %v269 = vpop.f32.mrf.mxu0
      %v270 = vadd.f32 0.0, %v269
      %271 = vmatprep.mubr.f32.mxu0 0.0
      %272 = vmatmul.mubr.f32.gmra.mxu0 %v192
      %v273 = vpop.f32.mrf.mxu0
      %v274 = vadd.f32 0.0, %v273
      %v275 = vpop.f32.mrf.mxu0
      %v276 = vadd.f32 0.0, %v275
      %277 = vdwg.mxu0
      %278 = vst [vmem:[%s181] sm:$0xff] %v268
      %279 = vst [vmem:[%s181 + $0x8] sm:$0xff] %v270
      %280 = vst [vmem:[%s181 + $0x10] sm:$0xf] %v274
      %281 = vst [vmem:[%s181 + $0x18] sm:$0xf] %v276
      %s282 = smul.u32 2, %s18
      %p283 = scmp.lt.s32.totalorder %s17, 1
      %s284 = scalar_select %p283, %s17, 1
      %p285 = scmp.lt.s32.totalorder %s282, 1
      %s286 = scalar_select %p285, %s282, 1
      %s287 = smul.addr %s284, 4
      %s288 = sadd.s32 %s286, %s287
      %s289 = smul.addr %s288, 8
      %s290 = scalar_lea.vmem %s2, %s289
      // Predicated region
      $region29: #{tpu_custom_call.1} parent=27 // pred_check
        %p291 = pneg %p94
      $region30: #{tpu_custom_call.1} parent=27 // pred_check_branch
        %293 = sbr.rel (%p291) target = $region32
      $region31: #{tpu_custom_call.1} parent=27 // pred_region
        %s294 = smul.u32 2, %s18
      $region32: #{tpu_custom_call.1} parent=27 // pred_fallthru
        _
    $region28: #{tpu_custom_call.1} parent=5 // pred_fallthru
      _
    %p295 = scmp.le.s32.totalorder 2, %s8
    // Predicated region
    $region33: #{tpu_custom_call.1} parent=5 // pred_check
      %p296 = pneg %p295
    $region34: #{tpu_custom_call.1} parent=5 // pred_check_branch
      %298 = sbr.rel (%p296) target = $region36
    $region35: #{tpu_custom_call.1} parent=5 // pred_region
      %s299 = ssub.s32 %s8, 2
      // Predicated region
      $region37: #{tpu_custom_call.1} parent=35 // pred_check
        %p300 = pneg %p100
      $region38: #{tpu_custom_call.1} parent=35 // pred_check_branch
        %302 = sbr.rel (%p300) target = $region40
      $region39: #{tpu_custom_call.1} parent=35 // pred_region
        %s303 = smul.u32 2, %s20
        %p304 = scmp.lt.s32.totalorder %s19, 1
        %s305 = scalar_select %p304, %s19, 1
        %p306 = scmp.lt.s32.totalorder %s303, 1
        %s307 = scalar_select %p306, %s303, 1
        %s308 = smul.addr %s305, 4
        %s309 = sadd.s32 %s307, %s308
        %s310 = smul.addr %s309, 8
        %s311 = scalar_lea.vmem %s2, %s310
      $region40: #{tpu_custom_call.1} parent=35 // pred_fallthru
        _
    $region36: #{tpu_custom_call.1} parent=5 // pred_fallthru
      _
  $region6: #{tpu_custom_call.1} parent=0 // loop_footer
    %s12 = sadd.s32 1, %s8
  $region7: #{tpu_custom_call.1} parent=0 // loop_footer_branch
    %7 = sbr.rel target = $region3
  $region8: #{tpu_custom_call.1} parent=0 // loop_exit
    _

</llo_original>
